<compile_context>
chip_gen: v7x
topology: tpu7x:2x2x1
jax: 0.10.0
libtpu: 0.0.40
codegen_flags: <defaults>
</compile_context>

<pallas_src>
import functools
import numpy as np
import jax
import jax.numpy as jnp
from jax.experimental import pallas as pl
from jax.experimental.pallas import tpu as pltpu


# ---------------------------------------------------------------------------
# Tiled matmul (+ bias + ReLU) Pallas kernel  (used for the conv stages)
# ---------------------------------------------------------------------------
def _round_up(x, m):
    return ((x + m - 1) // m) * m


def _pick_tile(padded, cap):
    """padded is a multiple of 128; return a tile (<=cap) that divides it."""
    t = min(cap, padded)
    while padded % t:
        t -= 128
    return t


def _mm_kernel(a_ref, b_ref, bias_ref, o_ref, acc_ref, *, relu):
    k = pl.program_id(2)

    @pl.when(k == 0)
    def _():
        acc_ref[...] = jnp.zeros_like(acc_ref)

    acc_ref[...] += jnp.dot(a_ref[...], b_ref[...],
                            preferred_element_type=jnp.float32)

    @pl.when(k == pl.num_programs(2) - 1)
    def _():
        r = acc_ref[...] + bias_ref[...]        # f32 epilogue (bias broadcast)
        if relu:
            r = jnp.maximum(r, 0.0)
        o_ref[...] = r.astype(o_ref.dtype)


def matmul_fused(a, w, bias=None, *, relu=False, out_dtype=jnp.float32,
                 tm_cap=512, tn_cap=256, tk_cap=256):
    """(ReLU)(a @ w + bias) on the MXU.  a:[M,K], w:[K,N], bias:[N] or None.

    Operands are cast to bf16 and zero-padded to multiples of 128; the f32
    accumulator lives in VMEM scratch across the K grid axis.  Returns the
    padded [Mp, Np] result; callers slice the valid region."""
    M, K = a.shape
    K2, N = w.shape
    assert K == K2
    Mp, Kp, Np = _round_up(M, 128), _round_up(K, 128), _round_up(N, 128)
    tm, tk, tn = (_pick_tile(Mp, tm_cap), _pick_tile(Kp, tk_cap),
                  _pick_tile(Np, tn_cap))

    a_p = jnp.pad(a.astype(jnp.bfloat16), ((0, Mp - M), (0, Kp - K)))
    w_p = jnp.pad(w.astype(jnp.bfloat16), ((0, Kp - K), (0, Np - N)))
    if bias is None:
        b_p = jnp.zeros((1, Np), jnp.float32)
    else:
        b_p = jnp.pad(bias.astype(jnp.float32), (0, Np - N)).reshape(1, Np)

    grid = (Mp // tm, Np // tn, Kp // tk)
    kernel = functools.partial(_mm_kernel, relu=relu)
    return pl.pallas_call(
        kernel,
        out_shape=jax.ShapeDtypeStruct((Mp, Np), out_dtype),
        grid_spec=pltpu.PrefetchScalarGridSpec(
            num_scalar_prefetch=0,
            grid=grid,
            in_specs=[
                pl.BlockSpec((tm, tk), lambda i, j, k: (i, k)),
                pl.BlockSpec((tk, tn), lambda i, j, k: (k, j)),
                pl.BlockSpec((1, tn), lambda i, j, k: (0, j)),
            ],
            out_specs=pl.BlockSpec((tm, tn), lambda i, j, k: (i, j)),
            scratch_shapes=[pltpu.VMEM((tm, tn), jnp.float32)],
        ),
        compiler_params=pltpu.CompilerParams(
            dimension_semantics=("parallel", "parallel", "arbitrary"),
            vmem_limit_bytes=32 * 1024 * 1024,
        ),
    )(a_p, w_p, b_p)


# ---------------------------------------------------------------------------
# Fused decoder kernel: channel-mean + separable bilinear upsample
#   per batch element b:  out[b] = Wh @ ( f[b] @ Q )
#   where f[b] is [H2, W2*C2] (last encoder map, (w2,c)-flattened),
#   Q[w2*c2 + c, w] = Ww[w, w2] / c2  (mean over channels folded in),
#   Wh is [H, H2] (bilinear interp along H, align_corners=False).
# ---------------------------------------------------------------------------
def _decoder_kernel(f_ref, q_ref, wh_ref, o_ref):
    # step 1: mean over channels + interp along W  (bf16 x bf16 -> f32)
    t = jnp.dot(f_ref[...], q_ref[...], preferred_element_type=jnp.float32)
    # step 2: interp along H (f32 x f32 -> f32)
    o_ref[...] = jnp.dot(wh_ref[...], t, preferred_element_type=jnp.float32)


def mean_bilinear_upsample(f, q, wh):
    """f:[B,H2,W2*C2] bf16, q:[W2*C2,W] bf16, wh:[H,H2] f32 -> [B,H,W] f32."""
    B, H2, Wc = f.shape
    W = q.shape[1]
    H = wh.shape[0]
    return pl.pallas_call(
        _decoder_kernel,
        out_shape=jax.ShapeDtypeStruct((B, H, W), jnp.float32),
        grid_spec=pltpu.PrefetchScalarGridSpec(
            num_scalar_prefetch=0,
            grid=(B,),
            in_specs=[
                pl.BlockSpec((None, H2, Wc), lambda b: (b, 0, 0)),
                pl.BlockSpec((Wc, W), lambda b: (0, 0)),
                pl.BlockSpec((H, H2), lambda b: (0, 0)),
            ],
            out_specs=pl.BlockSpec((None, H, W), lambda b: (b, 0, 0)),
        ),
        compiler_params=pltpu.CompilerParams(
            dimension_semantics=("parallel",),
        ),
    )(f, q, wh)


# ---------------------------------------------------------------------------
# Glue: im2col (NHWC), conv weight layout, bilinear weights, params
# ---------------------------------------------------------------------------
def im2col_nhwc(x, kh, kw, stride, pad):
    """NHWC -> patch rows [B*Ho*Wo, kh*kw*C], K ordered (i, j, c)."""
    # TODO(synk): replace im2col (kh*kw x patch duplication through HBM) with a
    # direct NHWC conv kernel accumulating kh*kw shifted matmuls inside Pallas.
    B, H, W, C = x.shape
    xp = jnp.pad(x, ((0, 0), (pad, pad), (pad, pad), (0, 0)))
    Ho = (H + 2 * pad - kh) // stride + 1
    Wo = (W + 2 * pad - kw) // stride + 1
    taps = [xp[:, i:i + stride * Ho:stride, j:j + stride * Wo:stride, :]
            for i in range(kh) for j in range(kw)]
    p = jnp.concatenate(taps, axis=-1)           # [B, Ho, Wo, kh*kw*C]
    return p.reshape(B * Ho * Wo, kh * kw * C), Ho, Wo


def conv_w_to_mat(w):
    """[Cout, Cin, kh, kw] -> [kh*kw*Cin, Cout], K ordered (i, j, cin)."""
    return jnp.transpose(w, (2, 3, 1, 0)).reshape(-1, w.shape[0])


def bilinear_weight_matrix(out_size, in_size):
    """1-D bilinear interpolation matrix, PyTorch align_corners=False."""
    W = np.zeros((out_size, in_size), dtype=np.float32)
    if in_size == 1:
        W[:, 0] = 1.0
        return W
    scale = in_size / out_size
    for o in range(out_size):
        src = max((o + 0.5) * scale - 0.5, 0.0)
        i0 = min(int(np.floor(src)), in_size - 1)
        lam = src - i0
        i1 = min(i0 + 1, in_size - 1)
        W[o, i0] += 1.0 - lam
        W[o, i1] += lam
    return W


def build_upsample_weights(H, W, H2, W2, c2):
    """Host-side, built once.  q folds channel mean (1/c2) into the W-upsample:
       q[w2*c2 + c, w] = Ww[w, w2] / c2   so   [*, W2*c2] @ q = mean + W-interp."""
    ww = bilinear_weight_matrix(W, W2)           # [W, W2]
    wh = bilinear_weight_matrix(H, H2)           # [H, H2]
    q = np.zeros((W2 * c2, W), np.float32)
    for w2 in range(W2):
        q[w2 * c2: w2 * c2 + c2, :] = ww[:, w2][None, :] / c2
    return jnp.asarray(q), jnp.asarray(wh)


def init_params(key, c_in, c_mid, c_out, k=3):
    k1, k2, k3, k4 = jax.random.split(key, 4)
    return dict(
        w1=jax.random.normal(k1, (c_mid, c_in, k, k), jnp.float32) * 0.1,
        b1=jax.random.normal(k2, (c_mid,), jnp.float32) * 0.1,
        w2=jax.random.normal(k3, (c_out, c_mid, k, k), jnp.float32) * 0.1,
        b2=jax.random.normal(k4, (c_out,), jnp.float32) * 0.1,
    )


# ---------------------------------------------------------------------------
# Network.forward equivalent (jittable)
# ---------------------------------------------------------------------------
def network_forward(params, x, q, wh, phase="test"):
    B, C, H, W = x.shape
    x_nhwc = jnp.transpose(x, (0, 2, 3, 1))

    # encoder stage 1: conv3x3 s2 + ReLU  (bf16 feature writeback)
    p1, H1, W1 = im2col_nhwc(x_nhwc, 3, 3, 2, 1)
    c1 = params["w1"].shape[0]
    f1 = matmul_fused(p1, conv_w_to_mat(params["w1"]), params["b1"],
                      relu=True, out_dtype=jnp.bfloat16)
    f1 = f1[:B * H1 * W1, :c1].reshape(B, H1, W1, c1)

    # encoder stage 2: conv3x3 s2 + ReLU (last encoder feature map)
    p2, H2, W2 = im2col_nhwc(f1, 3, 3, 2, 1)
    c2 = params["w2"].shape[0]
    f2 = matmul_fused(p2, conv_w_to_mat(params["w2"]), params["b2"],
                      relu=True, out_dtype=jnp.bfloat16)
    f2 = f2[:B * H2 * W2, :c2].reshape(B, H2, W2 * c2)   # (w2, c)-flattened

    # decoder: channel mean + bilinear upsample, single fused pallas_call
    o = mean_bilinear_upsample(f2, q.astype(jnp.bfloat16), wh)   # [B, H, W]
    pred = o.reshape(B, 1, H, W)

    return {"sal": [pred], "final": pred}


# ---------------------------------------------------------------------------
# Pure-JAX reference with matching bf16 operand quantization
# ---------------------------------------------------------------------------
def _ref_mm(a, b, bias=None, relu=False):
    r = jnp.dot(a.astype(jnp.bfloat16), b.astype(jnp.bfloat16),
                preferred_element_type=jnp.float32)
    if bias is not None:
        r = r + bias.astype(jnp.float32)
    if relu:
        r = jnp.maximum(r, 0.0)
    return r


def network_forward_ref(params, x, q, wh):
    B, C, H, W = x.shape
    x_nhwc = jnp.transpose(x, (0, 2, 3, 1))
    p1, H1, W1 = im2col_nhwc(x_nhwc, 3, 3, 2, 1)
    c1 = params["w1"].shape[0]
    f1 = _ref_mm(p1, conv_w_to_mat(params["w1"]), params["b1"], relu=True)
    f1 = f1.astype(jnp.bfloat16).reshape(B, H1, W1, c1)
    p2, H2, W2 = im2col_nhwc(f1, 3, 3, 2, 1)
    c2 = params["w2"].shape[0]
    f2 = _ref_mm(p2, conv_w_to_mat(params["w2"]), params["b2"], relu=True)
    f2 = f2.astype(jnp.bfloat16).reshape(B, H2, W2 * c2)
    t = jnp.einsum("bic,cw->biw", f2, q.astype(jnp.bfloat16),
                   preferred_element_type=jnp.float32)
    o = jnp.einsum("hi,biw->bhw", wh.astype(jnp.float32), t)
    return o.reshape(B, 1, H, W)


if __name__ == "__main__":
    key = jax.random.PRNGKey(0)
    kx, kp = jax.random.split(key)

    B, C, H, W = 2, 4, 16, 16
    c_mid, c_out = 8, 16
    x = jax.random.normal(kx, (B, C, H, W), jnp.float32)
    params = init_params(kp, c_in=C, c_mid=c_mid, c_out=c_out)

    # static feature-map geometry of the two stride-2 convs
    conv_out = lambda s: (s + 2 - 3) // 2 + 1
    H1, W1 = conv_out(H), conv_out(W)
    H2, W2 = conv_out(H1), conv_out(W1)

    # hoisted (one-time) bilinear weight construction, mean folded into q
    q, wh = build_upsample_weights(H, W, H2, W2, c2=c_out)

    fwd = jax.jit(network_forward, static_argnames=("phase",))
    out = fwd(params, x, q, wh, phase="test")
    pred = jax.block_until_ready(out["final"])

    assert pred.shape == (B, 1, H, W), pred.shape
    assert out["sal"][0].shape == (B, 1, H, W)

    ref = jax.block_until_ready(network_forward_ref(params, x, q, wh))
    if not np.allclose(np.asarray(pred), np.asarray(ref), atol=2e-3, rtol=2e-3):
        raise SystemExit("mismatch vs reference")

    print("KERNEL_OK")
</pallas_src>

<mosaic_0001>
module attributes {stable_mosaic.version = 11 : i64} {
  func.func @_mm_kernel(%arg0: i32, %arg1: i32, %arg2: i32, %arg3: memref<128x128xbf16, #tpu.memory_space<vmem>>, %arg4: memref<128x128xbf16, #tpu.memory_space<vmem>>, %arg5: memref<1x128xf32, #tpu.memory_space<vmem>>, %arg6: memref<128x128xbf16, #tpu.memory_space<vmem>>, %arg7: memref<128x128xf32, #tpu.memory_space<vmem>>) attributes {dimension_semantics = [#tpu.dimension_semantics<parallel>, #tpu.dimension_semantics<parallel>, #tpu.dimension_semantics<arbitrary>], iteration_bounds = array<i64: 1, 1, 1>, scalar_prefetch = 0 : i64, scratch_operands = 1 : i64, tpu.core_type = #tpu.core_type<tc>, window_params = [{transform_indices = @transform_0, window_bounds = array<i64: 128, 128>}, {transform_indices = @transform_1, window_bounds = array<i64: 128, 128>}, {transform_indices = @transform_2, window_bounds = array<i64: 1, 128>}, {transform_indices = @transform_3, window_bounds = array<i64: 128, 128>}]} {
    %c0_i32 = arith.constant 0 : i32
    %0 = arith.cmpi eq, %arg2, %c0_i32 : i32
    %1 = arith.extui %0 : i1 to i32
    %c0_i32_0 = arith.constant 0 : i32
    %2 = arith.cmpi ne, %1, %c0_i32_0 : i32
    scf.if %2 {
      %cst_10 = arith.constant 0.000000e+00 : f32
      %12 = vector.broadcast %cst_10 : f32 to vector<128x128xf32>
      %c0_11 = arith.constant 0 : index
      %c0_12 = arith.constant 0 : index
      %13 = vector.load %arg7[%c0_11, %c0_12] : memref<128x128xf32, #tpu.memory_space<vmem>>, vector<128x128xf32>
      tpu.vector_store %arg7[%c0_11, %c0_12], %12 {strides = array<i32>} : memref<128x128xf32, #tpu.memory_space<vmem>>, vector<128x128xf32>,
    } else {
    }
    %c0 = arith.constant 0 : index
    %c0_1 = arith.constant 0 : index
    %3 = vector.load %arg7[%c0, %c0_1] : memref<128x128xf32, #tpu.memory_space<vmem>>, vector<128x128xf32>
    %c0_2 = arith.constant 0 : index
    %c0_3 = arith.constant 0 : index
    %4 = vector.load %arg3[%c0_2, %c0_3] : memref<128x128xbf16, #tpu.memory_space<vmem>>, vector<128x128xbf16>
    %c0_4 = arith.constant 0 : index
    %c0_5 = arith.constant 0 : index
    %5 = vector.load %arg4[%c0_4, %c0_5] : memref<128x128xbf16, #tpu.memory_space<vmem>>, vector<128x128xbf16>
    %cst = arith.constant dense<0.000000e+00> : vector<128x128xf32>
    %6 = tpu.matmul %4, %5, %cst {dimension_numbers = #tpu.dot_dimension_numbers<[1], [0], [0], [1], [0, 0, 1, 1], [], []>} : vector<128x128xbf16>, vector<128x128xbf16>, vector<128x128xf32> -> vector<128x128xf32>
    %7 = arith.addf %3, %6 : vector<128x128xf32>
    %c0_6 = arith.constant 0 : index
    %c0_7 = arith.constant 0 : index
    %8 = vector.load %arg7[%c0_6, %c0_7] : memref<128x128xf32, #tpu.memory_space<vmem>>, vector<128x128xf32>
    tpu.vector_store %arg7[%c0_6, %c0_7], %7 {strides = array<i32>} : memref<128x128xf32, #tpu.memory_space<vmem>>, vector<128x128xf32>,
    %c0_i32_8 = arith.constant 0 : i32
    %9 = arith.cmpi eq, %arg2, %c0_i32_8 : i32
    %10 = arith.extui %9 : i1 to i32
    %c0_i32_9 = arith.constant 0 : i32
    %11 = arith.cmpi ne, %10, %c0_i32_9 : i32
    scf.if %11 {
      %c0_10 = arith.constant 0 : index
      %c0_11 = arith.constant 0 : index
      %12 = vector.load %arg7[%c0_10, %c0_11] : memref<128x128xf32, #tpu.memory_space<vmem>>, vector<128x128xf32>
      %c0_12 = arith.constant 0 : index
      %c0_13 = arith.constant 0 : index
      %13 = vector.load %arg5[%c0_12, %c0_13] : memref<1x128xf32, #tpu.memory_space<vmem>>, vector<1x128xf32>
      %14 = vector.broadcast %13 : vector<1x128xf32> to vector<128x128xf32>
      %15 = arith.addf %12, %14 : vector<128x128xf32>
      %cst_14 = arith.constant 0.000000e+00 : f32
      %16 = vector.broadcast %cst_14 : f32 to vector<128x128xf32>
      %17 = arith.maximumf %15, %16 : vector<128x128xf32>
      %18 = arith.truncf %17 : vector<128x128xf32> to vector<128x128xbf16>
      %c0_15 = arith.constant 0 : index
      %c0_16 = arith.constant 0 : index
      %19 = vector.load %arg6[%c0_15, %c0_16] : memref<128x128xbf16, #tpu.memory_space<vmem>>, vector<128x128xbf16>
      tpu.vector_store %arg6[%c0_15, %c0_16], %18 {strides = array<i32>} : memref<128x128xbf16, #tpu.memory_space<vmem>>, vector<128x128xbf16>,
    } else {
    }
    return
  }
  func.func @transform_0(%arg0: i32, %arg1: i32, %arg2: i32) -> (i32, i32) {
    %c0_i32 = arith.constant 0 : i32
    return %arg0, %arg2 : i32, i32
  }
  func.func @transform_1(%arg0: i32, %arg1: i32, %arg2: i32) -> (i32, i32) {
    %c0_i32 = arith.constant 0 : i32
    return %arg2, %arg1 : i32, i32
  }
  func.func @transform_2(%arg0: i32, %arg1: i32, %arg2: i32) -> (i32, i32) {
    %c0_i32 = arith.constant 0 : i32
    %c0_i32_0 = arith.constant 0 : i32
    return %c0_i32, %arg1 : i32, i32
  }
  func.func @transform_3(%arg0: i32, %arg1: i32, %arg2: i32) -> (i32, i32) {
    %c0_i32 = arith.constant 0 : i32
    return %arg0, %arg1 : i32, i32
  }
}

module attributes {stable_mosaic.version = 11 : i64} {
  func.func @_decoder_kernel(%arg0: i32, %arg1: memref<1x4x64xbf16, #tpu.memory_space<vmem>>, %arg2: memref<64x16xbf16, #tpu.memory_space<vmem>>, %arg3: memref<16x4xf32, #tpu.memory_space<vmem>>, %arg4: memref<1x16x16xf32, #tpu.memory_space<vmem>>) attributes {dimension_semantics = [#tpu.dimension_semantics<parallel>], iteration_bounds = array<i64: 2>, scalar_prefetch = 0 : i64, scratch_operands = 0 : i64, tpu.core_type = #tpu.core_type<tc>, window_params = [{transform_indices = @transform_0, window_bounds = array<i64: 1, 4, 64>}, {pipeline_mode = #tpu.pipeline_mode<synchronous>, transform_indices = @transform_1, window_bounds = array<i64: 64, 16>}, {pipeline_mode = #tpu.pipeline_mode<synchronous>, transform_indices = @transform_2, window_bounds = array<i64: 16, 4>}, {transform_indices = @transform_3, window_bounds = array<i64: 1, 16, 16>}]} {
    %c0 = arith.constant 0 : index
    %c0_0 = arith.constant 0 : index
    %c0_1 = arith.constant 0 : index
    %0 = vector.load %arg1[%c0, %c0_0, %c0_1] : memref<1x4x64xbf16, #tpu.memory_space<vmem>>, vector<1x4x64xbf16>
    %1 = vector.shape_cast %0 : vector<1x4x64xbf16> to vector<4x64xbf16>
    %c0_2 = arith.constant 0 : index
    %c0_3 = arith.constant 0 : index
    %2 = vector.load %arg2[%c0_2, %c0_3] : memref<64x16xbf16, #tpu.memory_space<vmem>>, vector<64x16xbf16>
    %cst = arith.constant dense<0.000000e+00> : vector<4x16xf32>
    %3 = tpu.matmul %1, %2, %cst {dimension_numbers = #tpu.dot_dimension_numbers<[1], [0], [0], [1], [0, 0, 1, 1], [], []>} : vector<4x64xbf16>, vector<64x16xbf16>, vector<4x16xf32> -> vector<4x16xf32>
    %c0_4 = arith.constant 0 : index
    %c0_5 = arith.constant 0 : index
    %4 = vector.load %arg3[%c0_4, %c0_5] : memref<16x4xf32, #tpu.memory_space<vmem>>, vector<16x4xf32>
    %cst_6 = arith.constant dense<0.000000e+00> : vector<16x16xf32>
    %5 = tpu.matmul %4, %3, %cst_6 {dimension_numbers = #tpu.dot_dimension_numbers<[1], [0], [0], [1], [0, 0, 1, 1], [], []>} : vector<16x4xf32>, vector<4x16xf32>, vector<16x16xf32> -> vector<16x16xf32>
    %c0_7 = arith.constant 0 : index
    %c0_8 = arith.constant 0 : index
    %c0_9 = arith.constant 0 : index
    %6 = vector.load %arg4[%c0_7, %c0_8, %c0_9] : memref<1x16x16xf32, #tpu.memory_space<vmem>>, vector<1x16x16xf32>
    %7 = vector.shape_cast %6 : vector<1x16x16xf32> to vector<16x16xf32>
    %8 = vector.shape_cast %5 : vector<16x16xf32> to vector<1x16x16xf32>
    tpu.vector_store %arg4[%c0_7, %c0_8, %c0_9], %8 {strides = array<i32>} : memref<1x16x16xf32, #tpu.memory_space<vmem>>, vector<1x16x16xf32>,
    return
  }
  func.func @transform_0(%arg0: i32) -> (i32, i32, i32) {
    %c0_i32 = arith.constant 0 : i32
    %c0_i32_0 = arith.constant 0 : i32
    %c0_i32_1 = arith.constant 0 : i32
    return %arg0, %c0_i32, %c0_i32_0 : i32, i32, i32
  }
  func.func @transform_1(%arg0: i32) -> (i32, i32) {
    %c0_i32 = arith.constant 0 : i32
    %c0_i32_0 = arith.constant 0 : i32
    %c0_i32_1 = arith.constant 0 : i32
    return %c0_i32, %c0_i32_0 : i32, i32
  }
  func.func @transform_2(%arg0: i32) -> (i32, i32) {
    %c0_i32 = arith.constant 0 : i32
    %c0_i32_0 = arith.constant 0 : i32
    %c0_i32_1 = arith.constant 0 : i32
    return %c0_i32, %c0_i32_0 : i32, i32
  }
  func.func @transform_3(%arg0: i32) -> (i32, i32, i32) {
    %c0_i32 = arith.constant 0 : i32
    %c0_i32_0 = arith.constant 0 : i32
    %c0_i32_1 = arith.constant 0 : i32
    return %arg0, %c0_i32, %c0_i32_0 : i32, i32, i32
  }
}

</mosaic_0001>

<llo_original>
// kernel: network_forward.3
$region0: #{network_forward.3}
  #allocation0 [shape = 'u32[]', space=smem, size = 0x4, offset = 0x4, fixed_abs, tag = 'smem constant byte address 0x4 - core index']
  #allocation1 [shape = 'u32[144,128]{1,0:T(1,128)}', space=vmem, size = 0x12000, scoped, tag = 'internal scratch']
  #allocation2 [shape = 'f32[128,128]{1,0:T(8,128)}', space=vmem, size = 0x10000, scoped, tag = 'scratch operand']
  %s0 = inlined_call_operand.vmem [shape: bf16[128,128], index: 0, kind: input, shape index: {}]
  %s1 = inlined_call_operand.vmem [shape: bf16[128,128], index: 1, kind: input, shape index: {}]
  %s2 = inlined_call_operand.vmem [shape: f32[1,128], index: 2, kind: input, shape index: {}]
  %s3 = inlined_call_operand.vmem [shape: bf16[128,128], index: 3, kind: output, shape index: {}]
  %s4 = sld [smem:[#allocation0]]
  $region30: #{network_forward.3} parent=0
    _
  %s6 = ssub.s32 1, %s4
  %s7 = scalar_select 0, %s6, %s4
  // Predicated region
  $region2: #{network_forward.3} parent=0 // pred_check
    _
  $region3: #{network_forward.3} parent=0 // pred_check_branch
    %9 = sbr.rel (0) target = $region5
  $region4: #{network_forward.3} parent=0 // pred_region
    _
  $region5: #{network_forward.3} parent=0 // pred_fallthru
    _
  // Predicated region
  $region6: #{network_forward.3} parent=0 // pred_check
    _
  $region7: #{network_forward.3} parent=0 // pred_check_branch
    %11 = sbr.rel (0) target = $region9
  $region8: #{network_forward.3} parent=0 // pred_region
    _
  $region9: #{network_forward.3} parent=0 // pred_fallthru
    _
  // Predicated region
  $region10: #{network_forward.3} parent=0 // pred_check
    _
  $region11: #{network_forward.3} parent=0 // pred_check_branch
    %13 = sbr.rel (0) target = $region13
  $region12: #{network_forward.3} parent=0 // pred_region
    _
  $region13: #{network_forward.3} parent=0 // pred_fallthru
    _
  %p15 = scmp.eq.s32.totalorder 0, 0
  // Predicated region
  $region14: #{network_forward.3} parent=0 // pred_check
    %p16 = pneg %p15
  $region15: #{network_forward.3} parent=0 // pred_check_branch
    %18 = sbr.rel (%p16) target = $region17
  $region16: #{network_forward.3} parent=0 // pred_region
    %19 = vst [vmem:[#allocation2] sm:$0xff] 0.0
    %20 = vst [vmem:[#allocation2 + $0x8] sm:$0xff] 0.0
    %21 = vst [vmem:[#allocation2 + $0x10] sm:$0xff] 0.0
    %22 = vst [vmem:[#allocation2 + $0x18] sm:$0xff] 0.0
    %23 = vst [vmem:[#allocation2 + $0x20] sm:$0xff] 0.0
    %24 = vst [vmem:[#allocation2 + $0x28] sm:$0xff] 0.0
    %25 = vst [vmem:[#allocation2 + $0x30] sm:$0xff] 0.0
    %26 = vst [vmem:[#allocation2 + $0x38] sm:$0xff] 0.0
    %27 = vst [vmem:[#allocation2 + $0x40] sm:$0xff] 0.0
    %28 = vst [vmem:[#allocation2 + $0x48] sm:$0xff] 0.0
    %29 = vst [vmem:[#allocation2 + $0x50] sm:$0xff] 0.0
    %30 = vst [vmem:[#allocation2 + $0x58] sm:$0xff] 0.0
    %31 = vst [vmem:[#allocation2 + $0x60] sm:$0xff] 0.0
    %32 = vst [vmem:[#allocation2 + $0x68] sm:$0xff] 0.0
    %33 = vst [vmem:[#allocation2 + $0x70] sm:$0xff] 0.0
    %34 = vst [vmem:[#allocation2 + $0x78] sm:$0xff] 0.0
  $region17: #{network_forward.3} parent=0 // pred_fallthru
    _
  %v35 = vld [vmem:[#allocation2] sm:$0xff]
  %v36 = vld [vmem:[#allocation2 + $0x8] sm:$0xff]
  %v37 = vld [vmem:[#allocation2 + $0x10] sm:$0xff]
  %v38 = vld [vmem:[#allocation2 + $0x18] sm:$0xff]
  %v39 = vld [vmem:[#allocation2 + $0x20] sm:$0xff]
  %v40 = vld [vmem:[#allocation2 + $0x28] sm:$0xff]
  %v41 = vld [vmem:[#allocation2 + $0x30] sm:$0xff]
  %v42 = vld [vmem:[#allocation2 + $0x38] sm:$0xff]
  %v43 = vld [vmem:[#allocation2 + $0x40] sm:$0xff]
  %v44 = vld [vmem:[#allocation2 + $0x48] sm:$0xff]
  %v45 = vld [vmem:[#allocation2 + $0x50] sm:$0xff]
  %v46 = vld [vmem:[#allocation2 + $0x58] sm:$0xff]
  %v47 = vld [vmem:[#allocation2 + $0x60] sm:$0xff]
  %v48 = vld [vmem:[#allocation2 + $0x68] sm:$0xff]
  %v49 = vld [vmem:[#allocation2 + $0x70] sm:$0xff]
  %v50 = vld [vmem:[#allocation2 + $0x78] sm:$0xff]
  %v51 = vld [vmem:[%s0] sm:$0xf]
  %v52 = vld [vmem:[%s0 + $0x4] sm:$0xf]
  %v53 = vld [vmem:[%s0 + $0x8] sm:$0xf]
  %v54 = vld [vmem:[%s0 + $0xc] sm:$0xf]
  %v55 = vld [vmem:[%s0 + $0x10] sm:$0xf]
  %v56 = vld [vmem:[%s0 + $0x14] sm:$0xf]
  %v57 = vld [vmem:[%s0 + $0x18] sm:$0xf]
  %v58 = vld [vmem:[%s0 + $0x1c] sm:$0xf]
  %v59 = vld [vmem:[%s0 + $0x20] sm:$0xf]
  %v60 = vld [vmem:[%s0 + $0x24] sm:$0xf]
  %v61 = vld [vmem:[%s0 + $0x28] sm:$0xf]
  %v62 = vld [vmem:[%s0 + $0x2c] sm:$0xf]
  %v63 = vld [vmem:[%s0 + $0x30] sm:$0xf]
  %v64 = vld [vmem:[%s0 + $0x34] sm:$0xf]
  %v65 = vld [vmem:[%s0 + $0x38] sm:$0xf]
  %v66 = vld [vmem:[%s0 + $0x3c] sm:$0xf]
  %v67 = vld [vmem:[%s1] sm:$0xf]
  %v68 = vld [vmem:[%s1 + $0x4] sm:$0xf]
  %v69 = vld [vmem:[%s1 + $0x8] sm:$0xf]
  %v70 = vld [vmem:[%s1 + $0xc] sm:$0xf]
  %v71 = vld [vmem:[%s1 + $0x10] sm:$0xf]
  %v72 = vld [vmem:[%s1 + $0x14] sm:$0xf]
  %v73 = vld [vmem:[%s1 + $0x18] sm:$0xf]
  %v74 = vld [vmem:[%s1 + $0x1c] sm:$0xf]
  %v75 = vld [vmem:[%s1 + $0x20] sm:$0xf]
  %v76 = vld [vmem:[%s1 + $0x24] sm:$0xf]
  %v77 = vld [vmem:[%s1 + $0x28] sm:$0xf]
  %v78 = vld [vmem:[%s1 + $0x2c] sm:$0xf]
  %v79 = vld [vmem:[%s1 + $0x30] sm:$0xf]
  %v80 = vld [vmem:[%s1 + $0x34] sm:$0xf]
  %v81 = vld [vmem:[%s1 + $0x38] sm:$0xf]
  %v82 = vld [vmem:[%s1 + $0x3c] sm:$0xf]
  %v99 = vunpack.c.l.b16 %v51
  %v100 = vunpack.c.l.b16 %v52
  %v101 = vunpack.c.l.b16 %v53
  %v102 = vunpack.c.l.b16 %v54
  %v103 = vunpack.c.l.b16 %v55
  %v104 = vunpack.c.l.b16 %v56
  %v105 = vunpack.c.l.b16 %v57
  %v106 = vunpack.c.l.b16 %v58
  %v107 = vunpack.c.l.b16 %v59
  %v108 = vunpack.c.l.b16 %v60
  %v109 = vunpack.c.l.b16 %v61
  %v110 = vunpack.c.l.b16 %v62
  %v111 = vunpack.c.l.b16 %v63
  %v112 = vunpack.c.l.b16 %v64
  %v113 = vunpack.c.l.b16 %v65
  %v114 = vunpack.c.l.b16 %v66
  %v115 = vpack.c.b16 %v100, %v99
  %v116 = vpack.c.b16 %v102, %v101
  %v117 = vpack.c.b16 %v104, %v103
  %v118 = vpack.c.b16 %v106, %v105
  %v119 = vpack.c.b16 %v108, %v107
  %v120 = vpack.c.b16 %v110, %v109
  %v121 = vpack.c.b16 %v112, %v111
  %v122 = vpack.c.b16 %v114, %v113
  %v147 = vunpack.c.l.b16 %v67
  %v148 = vunpack.c.l.b16 %v68
  %v149 = vunpack.c.l.b16 %v69
  %v150 = vunpack.c.l.b16 %v70
  %v151 = vunpack.c.l.b16 %v71
  %v152 = vunpack.c.l.b16 %v72
  %v153 = vunpack.c.l.b16 %v73
  %v154 = vunpack.c.l.b16 %v74
  %v155 = vunpack.c.l.b16 %v75
  %v156 = vunpack.c.l.b16 %v76
  %v157 = vunpack.c.l.b16 %v77
  %v158 = vunpack.c.l.b16 %v78
  %v159 = vunpack.c.l.b16 %v79
  %v160 = vunpack.c.l.b16 %v80
  %v161 = vunpack.c.l.b16 %v81
  %v162 = vunpack.c.l.b16 %v82
  %v163 = vpack.c.b16 %v148, %v147
  %v164 = vpack.c.b16 %v150, %v149
  %v165 = vpack.c.b16 %v152, %v151
  %v166 = vpack.c.b16 %v154, %v153
  %v167 = vpack.c.b16 %v156, %v155
  %v168 = vpack.c.b16 %v158, %v157
  %v169 = vpack.c.b16 %v160, %v159
  %v170 = vpack.c.b16 %v162, %v161
  %179 = vmatprep.subr.bf16.mxu0 0
  %180 = vmatpush1.bf16.msra.mxu0 %v163
  %181 = vmatprep.subr.bf16.mxu0 0
  %182 = vmatpush1.bf16.msra.mxu0 %v164
  %183 = vmatprep.subr.bf16.mxu0 0
  %184 = vmatpush1.bf16.msra.mxu0 %v165
  %185 = vmatprep.subr.bf16.mxu0 0
  %186 = vmatpush1.bf16.msra.mxu0 %v166
  %187 = vmatprep.subr.bf16.mxu0 0
  %188 = vmatpush1.bf16.msra.mxu0 %v167
  %189 = vmatprep.subr.bf16.mxu0 0
  %190 = vmatpush1.bf16.msra.mxu0 %v168
  %191 = vmatprep.subr.bf16.mxu0 0
  %192 = vmatpush1.bf16.msra.mxu0 %v169
  %193 = vmatprep.subr.bf16.mxu0 0
  %194 = vmatpush1.bf16.msra.mxu0 %v170
  %195 = vmatprep.subr.bf16.mxu0 0
  %196 = vmatpush1.bf16.msra.mxu0 0
  %197 = vmatprep.subr.bf16.mxu0 0
  %198 = vmatpush1.bf16.msra.mxu0 0
  %199 = vmatprep.subr.bf16.mxu0 0
  %200 = vmatpush1.bf16.msra.mxu0 0
  %201 = vmatprep.subr.bf16.mxu0 0
  %202 = vmatpush1.bf16.msra.mxu0 0
  %203 = vmatprep.subr.bf16.mxu0 0
  %204 = vmatpush1.bf16.msra.mxu0 0
  %205 = vmatprep.subr.bf16.mxu0 0
  %206 = vmatpush1.bf16.msra.mxu0 0
  %207 = vmatprep.subr.bf16.mxu0 0
  %208 = vmatpush1.bf16.msra.mxu0 0
  %209 = vmatprep.subr.bf16.mxu0 0
  %210 = vmatpush1.bf16.msra.mxu0 0
  %211 = vmatprep.mubr.bf16.mxu0 0
  %212 = vmatmul.mubr.bf16.gmra.mrb[0].mxu0 %v115
  %v213 = vpop.f32.mrb[0].mxu0
  %v214 = vadd.f32 0.0, %v213
  %v215 = vpop.f32.mrb[0].mxu0
  %v216 = vpop.f32.mrb[0].mxu0
  %v217 = vadd.f32 0.0, %v216
  %v218 = vpop.f32.mrb[0].mxu0
  %219 = vmatprep.mubr.bf16.mxu0 0
  %220 = vmatmul.mubr.bf16.gmra.mrb[0].mxu0 %v116
  %v221 = vpop.f32.mrb[0].mxu0
  %v222 = vadd.f32 0.0, %v221
  %v223 = vpop.f32.mrb[0].mxu0
  %v224 = vpop.f32.mrb[0].mxu0
  %v225 = vadd.f32 0.0, %v224
  %v226 = vpop.f32.mrb[0].mxu0
  %227 = vmatprep.mubr.bf16.mxu0 0
  %228 = vmatmul.mubr.bf16.gmra.mrb[0].mxu0 %v117
  %v229 = vpop.f32.mrb[0].mxu0
  %v230 = vadd.f32 0.0, %v229
  %v231 = vpop.f32.mrb[0].mxu0
  %v232 = vpop.f32.mrb[0].mxu0
  %v233 = vadd.f32 0.0, %v232
  %v234 = vpop.f32.mrb[0].mxu0
  %235 = vmatprep.mubr.bf16.mxu0 0
  %236 = vmatmul.mubr.bf16.gmra.mrb[0].mxu0 %v118
  %v237 = vpop.f32.mrb[0].mxu0
  %v238 = vadd.f32 0.0, %v237
  %v239 = vpop.f32.mrb[0].mxu0
  %v240 = vpop.f32.mrb[0].mxu0
  %v241 = vadd.f32 0.0, %v240
  %v242 = vpop.f32.mrb[0].mxu0
  %243 = vmatprep.mubr.bf16.mxu0 0
  %244 = vmatmul.mubr.bf16.gmra.mrb[0].mxu0 %v119
  %v245 = vpop.f32.mrb[0].mxu0
  %v246 = vadd.f32 0.0, %v245
  %v247 = vpop.f32.mrb[0].mxu0
  %v248 = vpop.f32.mrb[0].mxu0
  %v249 = vadd.f32 0.0, %v248
  %v250 = vpop.f32.mrb[0].mxu0
  %251 = vmatprep.mubr.bf16.mxu0 0
  %252 = vmatmul.mubr.bf16.gmra.mrb[0].mxu0 %v120
  %v253 = vpop.f32.mrb[0].mxu0
  %v254 = vadd.f32 0.0, %v253
  %v255 = vpop.f32.mrb[0].mxu0
  %v256 = vpop.f32.mrb[0].mxu0
  %v257 = vadd.f32 0.0, %v256
  %v258 = vpop.f32.mrb[0].mxu0
  %259 = vmatprep.mubr.bf16.mxu0 0
  %260 = vmatmul.mubr.bf16.gmra.mrb[0].mxu0 %v121
  %v261 = vpop.f32.mrb[0].mxu0
  %v262 = vadd.f32 0.0, %v261
  %v263 = vpop.f32.mrb[0].mxu0
  %v264 = vpop.f32.mrb[0].mxu0
  %v265 = vadd.f32 0.0, %v264
  %v266 = vpop.f32.mrb[0].mxu0
  %267 = vmatprep.mubr.bf16.mxu0 0
  %268 = vmatmul.mubr.bf16.gmra.mrb[0].mxu0 %v122
  %v269 = vpop.f32.mrb[0].mxu0
  %v270 = vadd.f32 0.0, %v269
  %v271 = vpop.f32.mrb[0].mxu0
  %v272 = vpop.f32.mrb[0].mxu0
  %v273 = vadd.f32 0.0, %v272
  %v274 = vpop.f32.mrb[0].mxu0
  %275 = vdwg.mxu0
  %v276 = vadd.f32 %v35, %v214
  %v277 = vadd.f32 %v36, %v217
  %v278 = vadd.f32 %v37, %v222
  %v279 = vadd.f32 %v38, %v225
  %v280 = vadd.f32 %v39, %v230
  %v281 = vadd.f32 %v40, %v233
  %v282 = vadd.f32 %v41, %v238
  %v283 = vadd.f32 %v42, %v241
  %v284 = vadd.f32 %v43, %v246
  %v285 = vadd.f32 %v44, %v249
  %v286 = vadd.f32 %v45, %v254
  %v287 = vadd.f32 %v46, %v257
  %v288 = vadd.f32 %v47, %v262
  %v289 = vadd.f32 %v48, %v265
  %v290 = vadd.f32 %v49, %v270
  %v291 = vadd.f32 %v50, %v273
  %292 = vst [vmem:[#allocation2] sm:$0xff] %v276
  %293 = vst [vmem:[#allocation2 + $0x8] sm:$0xff] %v277
  %294 = vst [vmem:[#allocation2 + $0x10] sm:$0xff] %v278
  %295 = vst [vmem:[#allocation2 + $0x18] sm:$0xff] %v279
  %296 = vst [vmem:[#allocation2 + $0x20] sm:$0xff] %v280
  %297 = vst [vmem:[#allocation2 + $0x28] sm:$0xff] %v281
  %298 = vst [vmem:[#allocation2 + $0x30] sm:$0xff] %v282
  %299 = vst [vmem:[#allocation2 + $0x38] sm:$0xff] %v283
  %300 = vst [vmem:[#allocation2 + $0x40] sm:$0xff] %v284
  %301 = vst [vmem:[#allocation2 + $0x48] sm:$0xff] %v285
  %302 = vst [vmem:[#allocation2 + $0x50] sm:$0xff] %v286
  %303 = vst [vmem:[#allocation2 + $0x58] sm:$0xff] %v287
  %304 = vst [vmem:[#allocation2 + $0x60] sm:$0xff] %v288
  %305 = vst [vmem:[#allocation2 + $0x68] sm:$0xff] %v289
  %306 = vst [vmem:[#allocation2 + $0x70] sm:$0xff] %v290
  %307 = vst [vmem:[#allocation2 + $0x78] sm:$0xff] %v291
  // Predicated region
  $region18: #{network_forward.3} parent=0 // pred_check
    %p308 = pneg %p15
  $region19: #{network_forward.3} parent=0 // pred_check_branch
    %310 = sbr.rel (%p308) target = $region21
  $region20: #{network_forward.3} parent=0 // pred_region
    %v311 = vld [vmem:[#allocation2] sm:$0xff]
    %v312 = vld [vmem:[#allocation2 + $0x8] sm:$0xff]
    %v313 = vld [vmem:[#allocation2 + $0x10] sm:$0xff]
    %v314 = vld [vmem:[#allocation2 + $0x18] sm:$0xff]
    %v315 = vld [vmem:[#allocation2 + $0x20] sm:$0xff]
    %v316 = vld [vmem:[#allocation2 + $0x28] sm:$0xff]
    %v317 = vld [vmem:[#allocation2 + $0x30] sm:$0xff]
    %v318 = vld [vmem:[#allocation2 + $0x38] sm:$0xff]
    %v319 = vld [vmem:[#allocation2 + $0x40] sm:$0xff]
    %v320 = vld [vmem:[#allocation2 + $0x48] sm:$0xff]
    %v321 = vld [vmem:[#allocation2 + $0x50] sm:$0xff]
    %v322 = vld [vmem:[#allocation2 + $0x58] sm:$0xff]
    %v323 = vld [vmem:[#allocation2 + $0x60] sm:$0xff]
    %v324 = vld [vmem:[#allocation2 + $0x68] sm:$0xff]
    %v325 = vld [vmem:[#allocation2 + $0x70] sm:$0xff]
    %v326 = vld [vmem:[#allocation2 + $0x78] sm:$0xff]
    %v327 = vld [vmem:[%s2] sm:$0x1]
    %v329 = vlaneseq
    %v330 = vshrl.u32 %v329, 7
    %v331 = vsub.s32 0, %v330
    %v332 = vrot.slane %v327, %v331
    %v334 = vadd.f32 %v311, %v332
    %v335 = vadd.f32 %v312, %v332
    %v336 = vadd.f32 %v313, %v332
    %v337 = vadd.f32 %v314, %v332
    %v338 = vadd.f32 %v315, %v332
    %v339 = vadd.f32 %v316, %v332
    %v340 = vadd.f32 %v317, %v332
    %v341 = vadd.f32 %v318, %v332
    %v342 = vadd.f32 %v319, %v332
    %v343 = vadd.f32 %v320, %v332
    %v344 = vadd.f32 %v321, %v332
    %v345 = vadd.f32 %v322, %v332
    %v346 = vadd.f32 %v323, %v332
    %v347 = vadd.f32 %v324, %v332
    %v348 = vadd.f32 %v325, %v332
    %v349 = vadd.f32 %v326, %v332
    %v350 = vmax.f32 %v334, 0.0
    %v351 = vmax.f32 %v335, 0.0
    %v352 = vmax.f32 %v336, 0.0
    %v353 = vmax.f32 %v337, 0.0
    %v354 = vmax.f32 %v338, 0.0
    %v355 = vmax.f32 %v339, 0.0
    %v356 = vmax.f32 %v340, 0.0
    %v357 = vmax.f32 %v341, 0.0
    %v358 = vmax.f32 %v342, 0.0
    %v359 = vmax.f32 %v343, 0.0
    %v360 = vmax.f32 %v344, 0.0
    %v361 = vmax.f32 %v345, 0.0
    %v362 = vmax.f32 %v346, 0.0
    %v363 = vmax.f32 %v347, 0.0
    %v364 = vmax.f32 %v348, 0.0
    %v365 = vmax.f32 %v349, 0.0
    %v366 = vpack.c.bf16 %v351, %v350
    %v367 = vpack.c.bf16 %v353, %v352
    %v368 = vpack.c.bf16 %v355, %v354
    %v369 = vpack.c.bf16 %v357, %v356
    %v370 = vpack.c.bf16 %v359, %v358
    %v371 = vpack.c.bf16 %v361, %v360
    %v372 = vpack.c.bf16 %v363, %v362
    %v373 = vpack.c.bf16 %v365, %v364
    %v382 = vunpack.c.l.b16 %v366
    %v383 = vunpack.c.h.b16 %v366
    %v384 = vunpack.c.l.b16 %v367
    %v385 = vunpack.c.h.b16 %v367
    %v386 = vunpack.c.l.b16 %v368
    %v387 = vunpack.c.h.b16 %v368
    %v388 = vunpack.c.l.b16 %v369
    %v389 = vunpack.c.h.b16 %v369
    %v390 = vunpack.c.l.b16 %v370
    %v391 = vunpack.c.h.b16 %v370
    %v392 = vunpack.c.l.b16 %v371
    %v393 = vunpack.c.h.b16 %v371
    %v394 = vunpack.c.l.b16 %v372
    %v395 = vunpack.c.h.b16 %v372
    %v396 = vunpack.c.l.b16 %v373
    %v397 = vunpack.c.h.b16 %v373
    %v398 = vpack.c.b16 %v382, %v382
    %v399 = vpack.c.b16 %v383, %v383
    %v400 = vpack.c.b16 %v384, %v384
    %v401 = vpack.c.b16 %v385, %v385
    %v402 = vpack.c.b16 %v386, %v386
    %v403 = vpack.c.b16 %v387, %v387
    %v404 = vpack.c.b16 %v388, %v388
    %v405 = vpack.c.b16 %v389, %v389
    %v406 = vpack.c.b16 %v390, %v390
    %v407 = vpack.c.b16 %v391, %v391
    %v408 = vpack.c.b16 %v392, %v392
    %v409 = vpack.c.b16 %v393, %v393
    %v410 = vpack.c.b16 %v394, %v394
    %v411 = vpack.c.b16 %v395, %v395
    %v412 = vpack.c.b16 %v396, %v396
    %v413 = vpack.c.b16 %v397, %v397
    %430 = vst [vmem:[%s3] sm:$0xf] %v398
    %431 = vst [vmem:[%s3 + $0x4] sm:$0xf] %v399
    %432 = vst [vmem:[%s3 + $0x8] sm:$0xf] %v400
    %433 = vst [vmem:[%s3 + $0xc] sm:$0xf] %v401
    %434 = vst [vmem:[%s3 + $0x10] sm:$0xf] %v402
    %435 = vst [vmem:[%s3 + $0x14] sm:$0xf] %v403
    %436 = vst [vmem:[%s3 + $0x18] sm:$0xf] %v404
    %437 = vst [vmem:[%s3 + $0x1c] sm:$0xf] %v405
    %438 = vst [vmem:[%s3 + $0x20] sm:$0xf] %v406
    %439 = vst [vmem:[%s3 + $0x24] sm:$0xf] %v407
    %440 = vst [vmem:[%s3 + $0x28] sm:$0xf] %v408
    %441 = vst [vmem:[%s3 + $0x2c] sm:$0xf] %v409
    %442 = vst [vmem:[%s3 + $0x30] sm:$0xf] %v410
    %443 = vst [vmem:[%s3 + $0x34] sm:$0xf] %v411
    %444 = vst [vmem:[%s3 + $0x38] sm:$0xf] %v412
    %445 = vst [vmem:[%s3 + $0x3c] sm:$0xf] %v413
  $region21: #{network_forward.3} parent=0 // pred_fallthru
    _
  // Predicated region
  $region22: #{network_forward.3} parent=0 // pred_check
    _
  $region23: #{network_forward.3} parent=0 // pred_check_branch
    %447 = sbr.rel (0) target = $region25
  $region24: #{network_forward.3} parent=0 // pred_region
    _
  $region25: #{network_forward.3} parent=0 // pred_fallthru
    _
  // Predicated region
  $region26: #{network_forward.3} parent=0 // pred_check
    _
  $region27: #{network_forward.3} parent=0 // pred_check_branch
    %449 = sbr.rel (0) target = $region29
  $region28: #{network_forward.3} parent=0 // pred_region
    _
  $region29: #{network_forward.3} parent=0 // pred_fallthru
    _

// kernel: network_forward.5
$region0: #{network_forward.5}
  #allocation0 [shape = 'u32[]', space=smem, size = 0x4, offset = 0x4, fixed_abs, tag = 'smem constant byte address 0x4 - core index']
  #allocation1 [shape = 'u32[144,128]{1,0:T(1,128)}', space=vmem, size = 0x12000, scoped, tag = 'internal scratch']
  %s0 = inlined_call_operand.vmem [shape: bf16[2,4,64], index: 0, kind: input, shape index: {}]
  %s1 = inlined_call_operand.vmem [shape: bf16[64,16], index: 1, kind: input, shape index: {}]
  %s2 = inlined_call_operand.vmem [shape: f32[16,4], index: 2, kind: input, shape index: {}]
  %s3 = inlined_call_operand.vmem [shape: f32[2,16,16], index: 3, kind: output, shape index: {}]
  %s4 = sld [smem:[#allocation0]]
  $region45: #{network_forward.5} parent=0
    _
  %s6 = ssub.s32 1, %s4
  %s7 = scalar_select 0, %s6, %s4
  loop: start=0, step=1, limit=4
  $region2: #{network_forward.5} parent=0 // loop_pre_header
    _
  $region3: #{network_forward.5} parent=0 // loop_header
    %s9 = sphi 0, %s13
    %p10 = scmp.ge.s32.totalorder %s9, 4
    %s19 = sphi 0, %s21
    %s22 = sphi 0, %s19
    %s23 = sphi 0, %s22
    %s39 = sphi 0, %s23
    %s43 = sphi 0, %s43
    %s45 = sphi 0, %s43
    %s46 = sphi 0, %s45
    %s60 = sphi 0, %s46
    %s64 = sphi 0, %s64
    %s66 = sphi 0, %s64
    %s67 = sphi 0, %s66
    %s81 = sphi 0, %s67
    %s87 = sphi 0, %s89
    %s90 = sphi 0, %s87
    %s91 = sphi 0, %s90
    %s107 = sphi 0, %s91
  $region4: #{network_forward.5} parent=0 // loop_header_branch
    %12 = sbr.rel (%p10) target = $region8
  $region5: #{network_forward.5} parent=0 // loop_body
    %s14 = ssub.s32 %s9, 1
    %s15 = ssub.s32 %s9, 2
    %s16 = sadd.s32 %s9, 1
    %s17 = ssub.s32 %s9, %s16
    %p18 = scmp.eq.s32.totalorder %s17, 0
    %s20 = sadd.s32 %s19, 1
    %s21 = scalar_select %p18, %s19, %s20
    %p24 = pneg %p18
    %p25 = scmp.eq.s32.totalorder %s9, 1
    %p26 = por %p24, %p25
    %p27 = scmp.ne.s32.totalorder %s19, %s22
    %p28 = scmp.eq.s32.totalorder %s9, 0
    %p29 = por %p27, %p28
    %p30 = scmp.ne.s32.totalorder %s19, %s22
    %p31 = scmp.eq.s32.totalorder %s14, 1
    %p32 = por %p30, %p31
    %p33 = scmp.ne.s32.totalorder %s22, %s23
    %p34 = scmp.eq.s32.totalorder %s14, 0
    %p35 = por %p33, %p34
    %p36 = scmp.ne.s32.totalorder %s22, %s23
    %p37 = scmp.eq.s32.totalorder %s15, 1
    %p38 = por %p36, %p37
    %p40 = scmp.ne.s32.totalorder %s23, %s39
    %p41 = scmp.eq.s32.totalorder %s15, 0
    %p42 = por %p40, %p41
    %s44 = sadd.s32 %s43, 1
    %p47 = scmp.eq.s32.totalorder %s9, 1
    %p48 = scmp.ne.s32.totalorder %s43, %s45
    %p49 = scmp.eq.s32.totalorder %s9, 0
    %p50 = por %p48, %p49
    %p51 = scmp.ne.s32.totalorder %s43, %s45
    %p52 = scmp.eq.s32.totalorder %s14, 1
    %p53 = por %p51, %p52
    %p54 = scmp.ne.s32.totalorder %s45, %s46
    %p55 = scmp.eq.s32.totalorder %s14, 0
    %p56 = por %p54, %p55
    %p57 = scmp.ne.s32.totalorder %s45, %s46
    %p58 = scmp.eq.s32.totalorder %s15, 1
    %p59 = por %p57, %p58
    %p61 = scmp.ne.s32.totalorder %s46, %s60
    %p62 = scmp.eq.s32.totalorder %s15, 0
    %p63 = por %p61, %p62
    %s65 = sadd.s32 %s64, 1
    %p68 = scmp.eq.s32.totalorder %s9, 1
    %p69 = scmp.ne.s32.totalorder %s64, %s66
    %p70 = scmp.eq.s32.totalorder %s9, 0
    %p71 = por %p69, %p70
    %p72 = scmp.ne.s32.totalorder %s64, %s66
    %p73 = scmp.eq.s32.totalorder %s14, 1
    %p74 = por %p72, %p73
    %p75 = scmp.ne.s32.totalorder %s66, %s67
    %p76 = scmp.eq.s32.totalorder %s14, 0
    %p77 = por %p75, %p76
    %p78 = scmp.ne.s32.totalorder %s66, %s67
    %p79 = scmp.eq.s32.totalorder %s15, 1
    %p80 = por %p78, %p79
    %p82 = scmp.ne.s32.totalorder %s67, %s81
    %p83 = scmp.eq.s32.totalorder %s15, 0
    %p84 = por %p82, %p83
    %s85 = ssub.s32 %s9, %s16
    %p86 = scmp.eq.s32.totalorder %s85, 0
    %s88 = sadd.s32 %s87, 1
    %s89 = scalar_select %p86, %s87, %s88
    %p92 = pneg %p86
    %p93 = scmp.eq.s32.totalorder %s9, 1
    %p94 = por %p92, %p93
    %p95 = scmp.ne.s32.totalorder %s87, %s90
    %p96 = scmp.eq.s32.totalorder %s9, 0
    %p97 = por %p95, %p96
    %p98 = scmp.ne.s32.totalorder %s87, %s90
    %p99 = scmp.eq.s32.totalorder %s14, 1
    %p100 = por %p98, %p99
    %p101 = scmp.ne.s32.totalorder %s90, %s91
    %p102 = scmp.eq.s32.totalorder %s14, 0
    %p103 = por %p101, %p102
    %p104 = scmp.ne.s32.totalorder %s90, %s91
    %p105 = scmp.eq.s32.totalorder %s15, 1
    %p106 = por %p104, %p105
    %p108 = scmp.ne.s32.totalorder %s91, %s107
    %p109 = scmp.eq.s32.totalorder %s15, 0
    %p110 = por %p108, %p109
    %p111 = scmp.le.s32.totalorder 1, %s9
    %p112 = scmp.lt.s32.totalorder %s9, 3
    %p113 = pnand %p111, %p112
    %p114 = pneg %p113
    // Predicated region
    $region9: #{network_forward.5} parent=5 // pred_check
      _
    $region10: #{network_forward.5} parent=5 // pred_check_branch
      %116 = sbr.rel (%p113) target = $region12
    $region11: #{network_forward.5} parent=5 // pred_region
      %s117 = ssub.s32 %s9, 1
      // Predicated region
      $region13: #{network_forward.5} parent=11 // pred_check
        %p118 = pneg %p56
      $region14: #{network_forward.5} parent=11 // pred_check_branch
        %120 = sbr.rel (%p118) target = $region16
      $region15: #{network_forward.5} parent=11 // pred_region
        _
      $region16: #{network_forward.5} parent=11 // pred_fallthru
        _
      // Predicated region
      $region17: #{network_forward.5} parent=11 // pred_check
        %p121 = pneg %p77
      $region18: #{network_forward.5} parent=11 // pred_check_branch
        %123 = sbr.rel (%p121) target = $region20
      $region19: #{network_forward.5} parent=11 // pred_region
        _
      $region20: #{network_forward.5} parent=11 // pred_fallthru
        _
    $region12: #{network_forward.5} parent=5 // pred_fallthru
      _
    %p124 = scmp.lt.s32.totalorder %s9, 2
    // Predicated region
    $region21: #{network_forward.5} parent=5 // pred_check
      %p125 = pneg %p124
    $region22: #{network_forward.5} parent=5 // pred_check_branch
      %127 = sbr.rel (%p125) target = $region24
    $region23: #{network_forward.5} parent=5 // pred_region
      // Predicated region
      $region25: #{network_forward.5} parent=23 // pred_check
        %p128 = pneg %p29
      $region26: #{network_forward.5} parent=23 // pred_check_branch
        %130 = sbr.rel (%p128) target = $region28
      $region27: #{network_forward.5} parent=23 // pred_region
        %p131 = scmp.lt.s32.totalorder %s9, 1
        %s132 = scalar_select %p131, %s9, 1
        %s133 = smul.addr %s132, 2
        %s134 = scalar_lea.vmem %s0, %s133
      $region28: #{network_forward.5} parent=23 // pred_fallthru
        _
    $region24: #{network_forward.5} parent=5 // pred_fallthru
      _
    %p135 = scmp.le.s32.totalorder 1, %s9
    %p136 = scmp.lt.s32.totalorder %s9, 3
    %p137 = pnand %p135, %p136
    %p138 = pneg %p137
    // Predicated region
    $region29: #{network_forward.5} parent=5 // pred_check
      _
    $region30: #{network_forward.5} parent=5 // pred_check_branch
      %140 = sbr.rel (%p137) target = $region32
    $region31: #{network_forward.5} parent=5 // pred_region
      %s141 = ssub.s32 %s9, 1
      %p142 = scmp.lt.s32.totalorder %s14, 1
      %s143 = scalar_select %p142, %s14, 1
      %s144 = smul.addr %s143, 2
      %s145 = scalar_lea.vmem %s0, %s144
      %p146 = pneg %p35
      %p147 = pneg %p32
      %p148 = pneg %p56
      %p149 = pneg %p53
      %p150 = pneg %p77
      %p151 = pneg %p74
      %p152 = pneg %p103
      %p153 = pneg %p100
      %p154 = scmp.lt.s32.totalorder %s14, 1
      %s155 = scalar_select %p154, %s14, 1
      %s156 = smul.addr %s155, 2
      %s157 = smul.addr %s156, 8
      %s158 = scalar_lea.vmem %s3, %s157
      %p159 = scmp.lt.s32.totalorder %s14, 1
      %s160 = scalar_select %p159, %s14, 1
      %s161 = smul.addr %s160, 2
      %s162 = scalar_lea.vmem %s0, %s161
      %p163 = scmp.lt.s32.totalorder %s14, 1
      %s164 = scalar_select %p163, %s14, 1
      %s165 = smul.addr %s164, 2
      %s166 = smul.addr %s165, 8
      %s167 = scalar_lea.vmem %s3, %s166
      %v169 = vld [vmem:[%s162] sm:$0x3]
      %v170 = vld [vmem:[%s1] sm:$0xf]
      %v171 = vld [vmem:[%s1 + $0x4] sm:$0xf]
      %v172 = vld [vmem:[%s1 + $0x8] sm:$0xf]
      %v173 = vld [vmem:[%s1 + $0xc] sm:$0xf]
      %v174 = vld [vmem:[%s1 + $0x10] sm:$0xf]
      %v175 = vld [vmem:[%s1 + $0x14] sm:$0xf]
      %v176 = vld [vmem:[%s1 + $0x18] sm:$0xf]
      %v177 = vld [vmem:[%s1 + $0x1c] sm:$0xf]
      %v186 = vunpack.c.l.b16 %v170
      %v187 = vunpack.c.l.b16 %v171
      %v188 = vunpack.c.l.b16 %v172
      %v189 = vunpack.c.l.b16 %v173
      %v190 = vunpack.c.l.b16 %v174
      %v191 = vunpack.c.l.b16 %v175
      %v192 = vunpack.c.l.b16 %v176
      %v193 = vunpack.c.l.b16 %v177
      %v194 = vpack.c.b16 %v187, %v186
      %v195 = vpack.c.b16 %v189, %v188
      %v196 = vpack.c.b16 %v191, %v190
      %v197 = vpack.c.b16 %v193, %v192
      %vm202 = vcmask 523264
      %v204 = vsel %vm202, %v169, 0
      %206 = vmatprep.subr.bf16.mxu0 0
      %207 = vmatpush1.bf16.msra.mxu0 %v194
      %208 = vmatprep.subr.bf16.mxu0 0
      %209 = vmatpush1.bf16.msra.mxu0 %v195
      %210 = vmatprep.subr.bf16.mxu0 0
      %211 = vmatpush1.bf16.msra.mxu0 %v196
      %212 = vmatprep.subr.bf16.mxu0 0
      %213 = vmatpush1.bf16.msra.mxu0 %v197
      %214 = vmatprep.subr.bf16.mxu0 0
      %215 = vmatpush1.bf16.msra.mxu0 0
      %216 = vmatprep.subr.bf16.mxu0 0
      %217 = vmatpush1.bf16.msra.mxu0 0
      %218 = vmatprep.subr.bf16.mxu0 0
      %219 = vmatpush1.bf16.msra.mxu0 0
      %220 = vmatprep.subr.bf16.mxu0 0
      %221 = vmatpush1.bf16.msra.mxu0 0
      %222 = vmatprep.subr.bf16.mxu0 0
      %223 = vmatpush1.bf16.msra.mxu0 0
      %224 = vmatprep.subr.bf16.mxu0 0
      %225 = vmatpush1.bf16.msra.mxu0 0
      %226 = vmatprep.subr.bf16.mxu0 0
      %227 = vmatpush1.bf16.msra.mxu0 0
      %228 = vmatprep.subr.bf16.mxu0 0
      %229 = vmatpush1.bf16.msra.mxu0 0
      %230 = vmatprep.subr.bf16.mxu0 0
      %231 = vmatpush1.bf16.msra.mxu0 0
      %232 = vmatprep.subr.bf16.mxu0 0
      %233 = vmatpush1.bf16.msra.mxu0 0
      %234 = vmatprep.subr.bf16.mxu0 0
      %235 = vmatpush1.bf16.msra.mxu0 0
      %236 = vmatprep.subr.bf16.mxu0 0
      %237 = vmatpush1.bf16.msra.mxu0 0
      %238 = vmatprep.mubr.bf16.mxu0 0
      %239 = vmatmul.mubr.bf16.gmra.mrb[0].mxu0 %v204
      %v240 = vpop.f32.mrb[0].mxu0
      %v241 = vadd.f32 0.0, %v240
      %v242 = vpop.f32.mrb[0].mxu0
      %v243 = vpop.f32.mrb[0].mxu0
      %v244 = vpop.f32.mrb[0].mxu0
      %245 = vdwg.mxu0
      %v246 = vld [vmem:[%s2] sm:$0xff]
      %v247 = vld [vmem:[%s2 + $0x8] sm:$0xff]
      %vm248 = vcmask 31744
      %v250 = vsel %vm248, %v246, 0
      %v253 = vsel %vm248, %v247, 0
      %vm255 = vcmask 1043456
      %v257 = vsel %vm255, %v241, 0
      %259 = vmatprep.subr.mxu0 0.0
      %260 = vmatpush1.msra.mxu0 %v257
      %261 = vmatprep.subr.mxu0 0.0
      %262 = vmatpush1.msra.mxu0 0.0
      %263 = vmatprep.subr.mxu0 0.0
      %264 = vmatpush1.msra.mxu0 0.0
      %265 = vmatprep.subr.mxu0 0.0
      %266 = vmatpush1.msra.mxu0 0.0
      %267 = vmatprep.subr.mxu0 0.0
      %268 = vmatpush1.msra.mxu0 0.0
      %269 = vmatprep.subr.mxu0 0.0
      %270 = vmatpush1.msra.mxu0 0.0
      %271 = vmatprep.subr.mxu0 0.0
      %272 = vmatpush1.msra.mxu0 0.0
      %273 = vmatprep.subr.mxu0 0.0
      %274 = vmatpush1.msra.mxu0 0.0
      %275 = vmatprep.subr.mxu0 0.0
      %276 = vmatpush1.msra.mxu0 0.0
      %277 = vmatprep.subr.mxu0 0.0
      %278 = vmatpush1.msra.mxu0 0.0
      %279 = vmatprep.subr.mxu0 0.0
      %280 = vmatpush1.msra.mxu0 0.0
      %281 = vmatprep.subr.mxu0 0.0
      %282 = vmatpush1.msra.mxu0 0.0
      %283 = vmatprep.subr.mxu0 0.0
      %284 = vmatpush1.msra.mxu0 0.0
      %285 = vmatprep.subr.mxu0 0.0
      %286 = vmatpush1.msra.mxu0 0.0
      %287 = vmatprep.subr.mxu0 0.0
      %288 = vmatpush1.msra.mxu0 0.0
      %289 = vmatprep.subr.mxu0 0.0
      %290 = vmatpush1.msra.mxu0 0.0
      %291 = vmatprep.subr.mxu0 0.0
      %292 = vmatpush1.msra.mxu0 0.0
      %293 = vmatprep.subr.mxu0 0.0
      %294 = vmatpush1.msra.mxu0 0.0
      %295 = vmatprep.subr.mxu0 0.0
      %296 = vmatpush1.msra.mxu0 0.0
      %297 = vmatprep.subr.mxu0 0.0
      %298 = vmatpush1.msra.mxu0 0.0
      %299 = vmatprep.subr.mxu0 0.0
      %300 = vmatpush1.msra.mxu0 0.0
      %301 = vmatprep.subr.mxu0 0.0
      %302 = vmatpush1.msra.mxu0 0.0
      %303 = vmatprep.subr.mxu0 0.0
      %304 = vmatpush1.msra.mxu0 0.0
      %305 = vmatprep.subr.mxu0 0.0
      %306 = vmatpush1.msra.mxu0 0.0
      %307 = vmatprep.subr.mxu0 0.0
      %308 = vmatpush1.msra.mxu0 0.0
      %309 = vmatprep.subr.mxu0 0.0
      %310 = vmatpush1.msra.mxu0 0.0
      %311 = vmatprep.subr.mxu0 0.0
      %312 = vmatpush1.msra.mxu0 0.0
      %313 = vmatprep.subr.mxu0 0.0
      %314 = vmatpush1.msra.mxu0 0.0
      %315 = vmatprep.subr.mxu0 0.0
      %316 = vmatpush1.msra.mxu0 0.0
      %317 = vmatprep.subr.mxu0 0.0
      %318 = vmatpush1.msra.mxu0 0.0
      %319 = vmatprep.subr.mxu0 0.0
      %320 = vmatpush1.msra.mxu0 0.0
      %321 = vmatprep.subr.mxu0 0.0
      %322 = vmatpush1.msra.mxu0 0.0
      %323 = vmatprep.mubr.f32.mxu0 0.0
      %324 = vmatmul.mubr.f32.gmra.mrb[0].mxu0 %v250
      %v325 = vpop.f32.mrb[0].mxu0
      %v326 = vadd.f32 0.0, %v325
      %v327 = vpop.f32.mrb[0].mxu0
      %328 = vmatprep.mubr.f32.mxu0 0.0
      %329 = vmatmul.mubr.f32.gmra.mrb[0].mxu0 %v253
      %v330 = vpop.f32.mrb[0].mxu0
      %v331 = vadd.f32 0.0, %v330
      %v332 = vpop.f32.mrb[0].mxu0
      %333 = vdwg.mxu0
      %vm334 = vcmask 130048
      %335 = vst.msk [vmem:[%s167] sm:$0xff] %vm334, %v326
      %336 = vst.msk [vmem:[%s167 + $0x8] sm:$0xff] %vm334, %v331
      %p337 = scmp.lt.s32.totalorder %s14, 1
      %s338 = scalar_select %p337, %s14, 1
      %s339 = smul.addr %s338, 2
      %s340 = smul.addr %s339, 8
      %s341 = scalar_lea.vmem %s3, %s340
      // Predicated region
      $region33: #{network_forward.5} parent=31 // pred_check
        %p342 = pneg %p100
      $region34: #{network_forward.5} parent=31 // pred_check_branch
        %344 = sbr.rel (%p342) target = $region36
      $region35: #{network_forward.5} parent=31 // pred_region
        _
      $region36: #{network_forward.5} parent=31 // pred_fallthru
        _
    $region32: #{network_forward.5} parent=5 // pred_fallthru
      _
    %p345 = scmp.le.s32.totalorder 2, %s9
    // Predicated region
    $region37: #{network_forward.5} parent=5 // pred_check
      %p346 = pneg %p345
    $region38: #{network_forward.5} parent=5 // pred_check_branch
      %348 = sbr.rel (%p346) target = $region40
    $region39: #{network_forward.5} parent=5 // pred_region
      %s349 = ssub.s32 %s9, 2
      // Predicated region
      $region41: #{network_forward.5} parent=39 // pred_check
        %p350 = pneg %p106
      $region42: #{network_forward.5} parent=39 // pred_check_branch
        %352 = sbr.rel (%p350) target = $region44
      $region43: #{network_forward.5} parent=39 // pred_region
        %p353 = scmp.lt.s32.totalorder %s15, 1
        %s354 = scalar_select %p353, %s15, 1
        %s355 = smul.addr %s354, 2
        %s356 = smul.addr %s355, 8
        %s357 = scalar_lea.vmem %s3, %s356
      $region44: #{network_forward.5} parent=39 // pred_fallthru
        _
    $region40: #{network_forward.5} parent=5 // pred_fallthru
      _
  $region6: #{network_forward.5} parent=0 // loop_footer
    %s13 = sadd.s32 1, %s9
  $region7: #{network_forward.5} parent=0 // loop_footer_branch
    %8 = sbr.rel target = $region3
  $region8: #{network_forward.5} parent=0 // loop_exit
    _

</llo_original>
